<compile_context>
chip_gen: v7x
topology: tpu7x:2x2x1
jax: 0.10.0
libtpu: 0.0.40
codegen_flags: <defaults>
</compile_context>

<pallas_src>
import jax
import jax.numpy as jnp
import numpy as np
from jax import lax
from jax.experimental import pallas as pl
from jax.experimental.pallas import tpu as pltpu


def _round_up(x, m):
    return ((x + m - 1) // m) * m


# ----------------------------------------------------------------------------
# Kernel 1: pointwise (1x1) conv (BN scale pre-folded into W) + bias + SiLU
#   x_ref: (tile_p, Cin)   w_ref: (Cin, Cout)   b_ref: (1, Cout) f32
# ----------------------------------------------------------------------------
def _pw_conv_bias_silu_kernel(x_ref, w_ref, b_ref, o_ref):
    # MXU matmul in the input dtype, f32 accumulate; bias + SiLU in f32.
    y = jnp.dot(x_ref[...], w_ref[...], preferred_element_type=jnp.float32)
    y = y + b_ref[...]
    o_ref[...] = (y * jax.nn.sigmoid(y)).astype(o_ref.dtype)


def pw_conv_bias_silu(x_flat, w, bias, *, tile_p=512):
    P, Cin = x_flat.shape
    Cout = w.shape[1]
    tile_p = min(tile_p, _round_up(P, 8))  # second-to-last dim: multiple of 8
    grid = (pl.cdiv(P, tile_p),)           # remainder block handled by masking
    return pl.pallas_call(
        _pw_conv_bias_silu_kernel,
        out_shape=jax.ShapeDtypeStruct((P, Cout), x_flat.dtype),
        grid=grid,
        in_specs=[
            pl.BlockSpec((tile_p, Cin), lambda i: (i, 0)),
            pl.BlockSpec((Cin, Cout), lambda i: (0, 0)),
            pl.BlockSpec((1, Cout), lambda i: (0, 0)),
        ],
        out_specs=pl.BlockSpec((tile_p, Cout), lambda i: (i, 0)),
        compiler_params=pltpu.CompilerParams(dimension_semantics=("parallel",)),
    )(x_flat, w, bias)


# ----------------------------------------------------------------------------
# Kernel 2: fused triple 5x5/s1/p2 max-pool, channels-last.
#   x_ref: (H, W, C) tile of h1; writes y1, y2, y3 tiles.
#   pad_ref: (H+4, W+4, C) f32 VMEM scratch, borders held at finfo.min
#   (equivalent to torch.nn.MaxPool2d's -inf padding).
# Separable 5x5 max: 5 row-shift maxes (major-dim shifts, address-only) then
# 5 column-shift maxes (sublane shifts) -> 8 compares / element / pool.
# ----------------------------------------------------------------------------
def _maxpool5_chain3_kernel(x_ref, y1_ref, y2_ref, y3_ref, pad_ref):
    H, W, C = x_ref.shape
    neg = jnp.finfo(pad_ref.dtype).min
    # Full fill each step keeps borders at -inf regardless of megacore grid
    # sharding (scratch is per-core); interior is overwritten every pool pass.
    pad_ref[...] = jnp.full((H + 4, W + 4, C), neg, pad_ref.dtype)

    def pool_once(t):                      # t: (H, W, C) f32 value
        pad_ref[2:2 + H, 2:2 + W, :] = t   # interior; borders stay at -inf
        rm = pad_ref[0:H, :, :]            # row pass over dy (major-dim shifts)
        for dy in range(1, 5):
            rm = jnp.maximum(rm, pad_ref[dy:dy + H, :, :])
        out = rm[:, 0:W, :]                # column pass over dx (sublane shifts)
        for dx in range(1, 5):
            out = jnp.maximum(out, rm[:, dx:dx + W, :])
        return out

    y1 = pool_once(x_ref[...].astype(pad_ref.dtype))
    y1_ref[...] = y1.astype(y1_ref.dtype)
    y2 = pool_once(y1)
    y2_ref[...] = y2.astype(y2_ref.dtype)
    y3 = pool_once(y2)
    y3_ref[...] = y3.astype(y3_ref.dtype)


def maxpool5_chain3(x_nhwc, *, tile_c=None, vmem_budget_bytes=24 * 1024 * 1024):
    N, H, W, C = x_nhwc.shape
    if tile_c is None:
        itemsize = jnp.dtype(x_nhwc.dtype).itemsize

        def fits(tc):
            io = 4 * 2 * H * W * tc * itemsize          # (1 in + 3 out) x 2 bufs
            scratch = (H + 4) * (W + 4) * tc * 4        # f32 scratch
            return io + scratch <= vmem_budget_bytes

        tile_c = C
        if C % 128 == 0:
            tile_c = 128                                # always divides; floor
            for tc in (512, 384, 256, 128):
                if C % tc == 0 and fits(tc):
                    tile_c = tc
                    break
    assert C % tile_c == 0, "channel dim must be divisible by tile_c"
    spec = pl.BlockSpec((None, H, W, tile_c), lambda n, c: (n, 0, 0, c))
    out_sds = jax.ShapeDtypeStruct((N, H, W, C), x_nhwc.dtype)
    return pl.pallas_call(
        _maxpool5_chain3_kernel,
        out_shape=(out_sds, out_sds, out_sds),
        grid=(N, C // tile_c),
        in_specs=[spec],
        out_specs=(spec, spec, spec),
        scratch_shapes=[pltpu.VMEM((H + 4, W + 4, tile_c), jnp.float32)],
        compiler_params=pltpu.CompilerParams(
            dimension_semantics=("parallel", "parallel")),
    )(x_nhwc)


# ----------------------------------------------------------------------------
# Kernel 3: conv2 over the *virtual* concat [h1, y1, y2, y3]:
#   sum of four (tile_p, mid) x (mid, Cout) matmuls + bias + SiLU.
# Avoids materializing torch.cat in HBM entirely.
# ----------------------------------------------------------------------------
def _pw4_conv_bias_silu_kernel(x0_ref, x1_ref, x2_ref, x3_ref,
                               w0_ref, w1_ref, w2_ref, w3_ref, b_ref, o_ref):
    acc = jnp.dot(x0_ref[...], w0_ref[...], preferred_element_type=jnp.float32)
    acc = acc + jnp.dot(x1_ref[...], w1_ref[...], preferred_element_type=jnp.float32)
    acc = acc + jnp.dot(x2_ref[...], w2_ref[...], preferred_element_type=jnp.float32)
    acc = acc + jnp.dot(x3_ref[...], w3_ref[...], preferred_element_type=jnp.float32)
    y = acc + b_ref[...]
    o_ref[...] = (y * jax.nn.sigmoid(y)).astype(o_ref.dtype)


def pw4_conv_bias_silu(x0, x1, x2, x3, w0, w1, w2, w3, bias, *, tile_p=512):
    P, mid = x0.shape
    Cout = w0.shape[1]
    tile_p = min(tile_p, _round_up(P, 8))
    grid = (pl.cdiv(P, tile_p),)
    x_spec = pl.BlockSpec((tile_p, mid), lambda i: (i, 0))
    w_spec = pl.BlockSpec((mid, Cout), lambda i: (0, 0))
    return pl.pallas_call(
        _pw4_conv_bias_silu_kernel,
        out_shape=jax.ShapeDtypeStruct((P, Cout), x0.dtype),
        grid=grid,
        in_specs=[x_spec, x_spec, x_spec, x_spec,
                  w_spec, w_spec, w_spec, w_spec,
                  pl.BlockSpec((1, Cout), lambda i: (0, 0))],
        out_specs=pl.BlockSpec((tile_p, Cout), lambda i: (i, 0)),
        compiler_params=pltpu.CompilerParams(dimension_semantics=("parallel",)),
    )(x0, x1, x2, x3, w0, w1, w2, w3, bias)


# ----------------------------------------------------------------------------
# SPP forward (NCHW boundary, channels-last inside, no intermediate transposes,
# no host-side pad / concat).
# ----------------------------------------------------------------------------
def spp_forward(x, params, *, compute_dtype=None, tile_p=512):
    N, C, H, W = x.shape
    mid = params["w1"].shape[1]
    out_ch = params["w2"].shape[1]
    dt = compute_dtype if compute_dtype is not None else x.dtype

    # Fold BN scale into the weight columns (one-time, host-side).
    w1 = (params["w1"] * params["scale1"][None, :]).astype(dt)
    b1 = params["bias1"].reshape(1, mid).astype(jnp.float32)
    w2 = (params["w2"] * params["scale2"][None, :]).astype(dt)
    b2 = params["bias2"].reshape(1, out_ch).astype(jnp.float32)
    w2_parts = [w2[i * mid:(i + 1) * mid] for i in range(4)]

    # Single boundary relayout NCHW -> NHWC.
    x_nhwc = jnp.transpose(x, (0, 2, 3, 1)).astype(dt)       # (N, H, W, C)
    P = N * H * W

    # conv1: 1x1 conv (C -> mid) + folded BN + SiLU.
    h1_flat = pw_conv_bias_silu(x_nhwc.reshape(P, C), w1, b1, tile_p=tile_p)
    h1 = h1_flat.reshape(N, H, W, mid)

    # Three chained 5x5/s1/p2 max-pools fused in one kernel (stays in VMEM).
    y1, y2, y3 = maxpool5_chain3(h1)

    # conv2: 1x1 conv (4*mid -> out_ch) + BN + SiLU over the virtual concat.
    out_flat = pw4_conv_bias_silu(
        h1_flat, y1.reshape(P, mid), y2.reshape(P, mid), y3.reshape(P, mid),
        *w2_parts, b2, tile_p=tile_p)                          # (P, out_ch)

    out_nhwc = out_flat.reshape(N, H, W, out_ch)
    return jnp.transpose(out_nhwc, (0, 3, 1, 2)).astype(x.dtype)  # back to NCHW


# ----------------------------------------------------------------------------
# Pure-JAX reference (for correctness check)
# ----------------------------------------------------------------------------
def spp_reference(x, params):
    def conv_bn_silu(t, w, scale, bias):
        y = jnp.einsum("nchw,cd->ndhw", t, w, precision=lax.Precision.HIGHEST)
        y = y * scale[None, :, None, None] + bias[None, :, None, None]
        return y * jax.nn.sigmoid(y)

    def mp(t):
        return lax.reduce_window(
            t, -jnp.inf, lax.max,
            window_dimensions=(1, 1, 5, 5),
            window_strides=(1, 1, 1, 1),
            padding=((0, 0), (0, 0), (2, 2), (2, 2)),
        )

    h = conv_bn_silu(x, params["w1"], params["scale1"], params["bias1"])
    y1 = mp(h)
    y2 = mp(y1)
    y3 = mp(y2)
    cat = jnp.concatenate([h, y1, y2, y3], axis=1)
    return conv_bn_silu(cat, params["w2"], params["scale2"], params["bias2"])


def make_params(key, in_ch, out_ch, eps=1e-3):
    mid = in_ch // 2
    cat_ch = in_ch * 2
    ks = jax.random.split(key, 10)

    def fold_bn(gamma, beta, mean, var):
        scale = gamma / jnp.sqrt(var + eps)
        bias = beta - mean * scale
        return scale.astype(jnp.float32), bias.astype(jnp.float32)

    # conv1 weight: PyTorch Conv2d weight is (mid, in_ch, 1, 1); stored here in
    # its (in_ch, mid) matmul form.
    w1 = 0.2 * jax.random.normal(ks[0], (in_ch, mid), jnp.float32)
    g1 = 1.0 + 0.1 * jax.random.normal(ks[1], (mid,), jnp.float32)
    b1 = 0.1 * jax.random.normal(ks[2], (mid,), jnp.float32)
    m1 = 0.1 * jax.random.normal(ks[3], (mid,), jnp.float32)
    v1 = 1.0 + 0.1 * jnp.abs(jax.random.normal(ks[4], (mid,), jnp.float32))
    s1, bb1 = fold_bn(g1, b1, m1, v1)

    w2 = 0.2 * jax.random.normal(ks[5], (cat_ch, out_ch), jnp.float32)
    g2 = 1.0 + 0.1 * jax.random.normal(ks[6], (out_ch,), jnp.float32)
    b2 = 0.1 * jax.random.normal(ks[7], (out_ch,), jnp.float32)
    m2 = 0.1 * jax.random.normal(ks[8], (out_ch,), jnp.float32)
    v2 = 1.0 + 0.1 * jnp.abs(jax.random.normal(ks[9], (out_ch,), jnp.float32))
    s2, bb2 = fold_bn(g2, b2, m2, v2)

    return dict(w1=w1, scale1=s1, bias1=bb1, w2=w2, scale2=s2, bias2=bb2)


if __name__ == "__main__":
    key = jax.random.PRNGKey(0)
    k_x, k_p = jax.random.split(key)

    # Small shapes consistent with the module (SPP halves channels internally,
    # so use in_ch=16 -> mid=8 to keep the lane dim non-degenerate).
    N, in_ch, H, W = 2, 16, 16, 16
    out_ch = 32

    x = jax.random.normal(k_x, (N, in_ch, H, W), jnp.float32)
    params = make_params(k_p, in_ch, out_ch)

    ref = jax.block_until_ready(spp_reference(x, params))

    # f32 datapath: strict check against the reference.
    out = jax.block_until_ready(spp_forward(x, params))
    assert out.shape == (N, out_ch, H, W), out.shape
    np.testing.assert_allclose(np.asarray(out), np.asarray(ref), rtol=1e-3, atol=1e-3)

    # bf16 datapath (halves HBM traffic; native MXU format on v6e/v7x, f32
    # accumulate + f32 VPU epilogue kept for v5e). Loose tolerance vs f32 ref.
    out_bf16 = jax.block_until_ready(
        spp_forward(x, params, compute_dtype=jnp.bfloat16))
    assert out_bf16.shape == (N, out_ch, H, W), out_bf16.shape
    np.testing.assert_allclose(np.asarray(out_bf16), np.asarray(ref),
                               rtol=1e-1, atol=1e-1)

    print("KERNEL_OK")
</pallas_src>

<mosaic_0001>
module attributes {stable_mosaic.version = 11 : i64} {
  func.func @_pw_conv_bias_silu_kernel(%arg0: i32, %arg1: memref<512x16xf32, #tpu.memory_space<vmem>>, %arg2: memref<16x8xf32, #tpu.memory_space<vmem>>, %arg3: memref<1x8xf32, #tpu.memory_space<vmem>>, %arg4: memref<512x8xf32, #tpu.memory_space<vmem>>) attributes {dimension_semantics = [#tpu.dimension_semantics<parallel>], iteration_bounds = array<i64: 1>, scalar_prefetch = 0 : i64, scratch_operands = 0 : i64, tpu.core_type = #tpu.core_type<tc>, window_params = [{transform_indices = @transform_0, window_bounds = array<i64: 512, 16>}, {pipeline_mode = #tpu.pipeline_mode<synchronous>, transform_indices = @transform_1, window_bounds = array<i64: 16, 8>}, {pipeline_mode = #tpu.pipeline_mode<synchronous>, transform_indices = @transform_2, window_bounds = array<i64: 1, 8>}, {transform_indices = @transform_3, window_bounds = array<i64: 512, 8>}]} {
    %c0 = arith.constant 0 : index
    %c0_0 = arith.constant 0 : index
    %0 = vector.load %arg1[%c0, %c0_0] : memref<512x16xf32, #tpu.memory_space<vmem>>, vector<512x16xf32>
    %c0_1 = arith.constant 0 : index
    %c0_2 = arith.constant 0 : index
    %1 = vector.load %arg2[%c0_1, %c0_2] : memref<16x8xf32, #tpu.memory_space<vmem>>, vector<16x8xf32>
    %cst = arith.constant dense<0.000000e+00> : vector<512x8xf32>
    %2 = tpu.matmul %0, %1, %cst {dimension_numbers = #tpu.dot_dimension_numbers<[1], [0], [0], [1], [0, 0, 1, 1], [], []>} : vector<512x16xf32>, vector<16x8xf32>, vector<512x8xf32> -> vector<512x8xf32>
    %c0_3 = arith.constant 0 : index
    %c0_4 = arith.constant 0 : index
    %3 = vector.load %arg3[%c0_3, %c0_4] : memref<1x8xf32, #tpu.memory_space<vmem>>, vector<1x8xf32>
    %4 = vector.broadcast %3 : vector<1x8xf32> to vector<512x8xf32>
    %5 = arith.addf %2, %4 : vector<512x8xf32>
    %6 = arith.negf %5 : vector<512x8xf32>
    %7 = math.exp %6 : vector<512x8xf32>
    %cst_5 = arith.constant 1.000000e+00 : f32
    %8 = vector.broadcast %cst_5 : f32 to vector<512x8xf32>
    %9 = arith.addf %8, %7 : vector<512x8xf32>
    %10 = arith.divf %8, %9 : vector<512x8xf32>
    %11 = arith.mulf %5, %10 : vector<512x8xf32>
    %c0_6 = arith.constant 0 : index
    %c0_7 = arith.constant 0 : index
    %12 = vector.load %arg4[%c0_6, %c0_7] : memref<512x8xf32, #tpu.memory_space<vmem>>, vector<512x8xf32>
    tpu.vector_store %arg4[%c0_6, %c0_7], %11 {strides = array<i32>} : memref<512x8xf32, #tpu.memory_space<vmem>>, vector<512x8xf32>,
    return
  }
  func.func @transform_0(%arg0: i32) -> (i32, i32) {
    %c0_i32 = arith.constant 0 : i32
    %c0_i32_0 = arith.constant 0 : i32
    return %arg0, %c0_i32 : i32, i32
  }
  func.func @transform_1(%arg0: i32) -> (i32, i32) {
    %c0_i32 = arith.constant 0 : i32
    %c0_i32_0 = arith.constant 0 : i32
    %c0_i32_1 = arith.constant 0 : i32
    return %c0_i32, %c0_i32_0 : i32, i32
  }
  func.func @transform_2(%arg0: i32) -> (i32, i32) {
    %c0_i32 = arith.constant 0 : i32
    %c0_i32_0 = arith.constant 0 : i32
    %c0_i32_1 = arith.constant 0 : i32
    return %c0_i32, %c0_i32_0 : i32, i32
  }
  func.func @transform_3(%arg0: i32) -> (i32, i32) {
    %c0_i32 = arith.constant 0 : i32
    %c0_i32_0 = arith.constant 0 : i32
    return %arg0, %c0_i32 : i32, i32
  }
}

</mosaic_0001>

<llo_original>
// kernel: tpu_custom_call.1
$region0: #{tpu_custom_call.1}
  #allocation0 [shape = 'u32[]', space=smem, size = 0x4, offset = 0x4, fixed_abs, tag = 'smem constant byte address 0x4 - core index']
  #allocation1 [shape = 'u32[144,128]{1,0:T(1,128)}', space=vmem, size = 0x12000, scoped, tag = 'internal scratch']
  %s0 = inlined_call_operand.vmem [shape: f32[512,16], index: 0, kind: input, shape index: {}]
  %s1 = inlined_call_operand.vmem [shape: f32[16,8], index: 1, kind: input, shape index: {}]
  %s2 = inlined_call_operand.vmem [shape: f32[1,8], index: 2, kind: input, shape index: {}]
  %s3 = inlined_call_operand.vmem [shape: f32[512,8], index: 3, kind: output, shape index: {}]
  %s4 = sld [smem:[#allocation0]]
  $region22: #{tpu_custom_call.1} parent=0
    _
  %s6 = ssub.s32 1, %s4
  %s7 = scalar_select 0, %s6, %s4
  // Predicated region
  $region2: #{tpu_custom_call.1} parent=0 // pred_check
    _
  $region3: #{tpu_custom_call.1} parent=0 // pred_check_branch
    %9 = sbr.rel (0) target = $region5
  $region4: #{tpu_custom_call.1} parent=0 // pred_region
    _
  $region5: #{tpu_custom_call.1} parent=0 // pred_fallthru
    _
  // Predicated region
  $region6: #{tpu_custom_call.1} parent=0 // pred_check
    _
  $region7: #{tpu_custom_call.1} parent=0 // pred_check_branch
    %11 = sbr.rel (0) target = $region9
  $region8: #{tpu_custom_call.1} parent=0 // pred_region
    _
  $region9: #{tpu_custom_call.1} parent=0 // pred_fallthru
    _
  // Predicated region
  $region10: #{tpu_custom_call.1} parent=0 // pred_check
    _
  $region11: #{tpu_custom_call.1} parent=0 // pred_check_branch
    %13 = sbr.rel (0) target = $region13
  $region12: #{tpu_custom_call.1} parent=0 // pred_region
    _
  $region13: #{tpu_custom_call.1} parent=0 // pred_fallthru
    _
  %v14 = vld [vmem:[%s0] sm:$0xff]
  %v15 = vld [vmem:[%s0 + $0x8] sm:$0xff]
  %v16 = vld [vmem:[%s0 + $0x10] sm:$0xff]
  %v17 = vld [vmem:[%s0 + $0x18] sm:$0xff]
  %v18 = vld [vmem:[%s0 + $0x20] sm:$0xff]
  %v19 = vld [vmem:[%s0 + $0x28] sm:$0xff]
  %v20 = vld [vmem:[%s0 + $0x30] sm:$0xff]
  %v21 = vld [vmem:[%s0 + $0x38] sm:$0xff]
  %v22 = vld [vmem:[%s0 + $0x40] sm:$0xff]
  %v23 = vld [vmem:[%s0 + $0x48] sm:$0xff]
  %v24 = vld [vmem:[%s0 + $0x50] sm:$0xff]
  %v25 = vld [vmem:[%s0 + $0x58] sm:$0xff]
  %v26 = vld [vmem:[%s0 + $0x60] sm:$0xff]
  %v27 = vld [vmem:[%s0 + $0x68] sm:$0xff]
  %v28 = vld [vmem:[%s0 + $0x70] sm:$0xff]
  %v29 = vld [vmem:[%s0 + $0x78] sm:$0xff]
  %v30 = vld [vmem:[%s0 + $0x80] sm:$0xff]
  %v31 = vld [vmem:[%s0 + $0x88] sm:$0xff]
  %v32 = vld [vmem:[%s0 + $0x90] sm:$0xff]
  %v33 = vld [vmem:[%s0 + $0x98] sm:$0xff]
  %v34 = vld [vmem:[%s0 + $0xa0] sm:$0xff]
  %v35 = vld [vmem:[%s0 + $0xa8] sm:$0xff]
  %v36 = vld [vmem:[%s0 + $0xb0] sm:$0xff]
  %v37 = vld [vmem:[%s0 + $0xb8] sm:$0xff]
  %v38 = vld [vmem:[%s0 + $0xc0] sm:$0xff]
  %v39 = vld [vmem:[%s0 + $0xc8] sm:$0xff]
  %v40 = vld [vmem:[%s0 + $0xd0] sm:$0xff]
  %v41 = vld [vmem:[%s0 + $0xd8] sm:$0xff]
  %v42 = vld [vmem:[%s0 + $0xe0] sm:$0xff]
  %v43 = vld [vmem:[%s0 + $0xe8] sm:$0xff]
  %v44 = vld [vmem:[%s0 + $0xf0] sm:$0xff]
  %v45 = vld [vmem:[%s0 + $0xf8] sm:$0xff]
  %v46 = vld [vmem:[%s0 + $0x100] sm:$0xff]
  %v47 = vld [vmem:[%s0 + $0x108] sm:$0xff]
  %v48 = vld [vmem:[%s0 + $0x110] sm:$0xff]
  %v49 = vld [vmem:[%s0 + $0x118] sm:$0xff]
  %v50 = vld [vmem:[%s0 + $0x120] sm:$0xff]
  %v51 = vld [vmem:[%s0 + $0x128] sm:$0xff]
  %v52 = vld [vmem:[%s0 + $0x130] sm:$0xff]
  %v53 = vld [vmem:[%s0 + $0x138] sm:$0xff]
  %v54 = vld [vmem:[%s0 + $0x140] sm:$0xff]
  %v55 = vld [vmem:[%s0 + $0x148] sm:$0xff]
  %v56 = vld [vmem:[%s0 + $0x150] sm:$0xff]
  %v57 = vld [vmem:[%s0 + $0x158] sm:$0xff]
  %v58 = vld [vmem:[%s0 + $0x160] sm:$0xff]
  %v59 = vld [vmem:[%s0 + $0x168] sm:$0xff]
  %v60 = vld [vmem:[%s0 + $0x170] sm:$0xff]
  %v61 = vld [vmem:[%s0 + $0x178] sm:$0xff]
  %v62 = vld [vmem:[%s0 + $0x180] sm:$0xff]
  %v63 = vld [vmem:[%s0 + $0x188] sm:$0xff]
  %v64 = vld [vmem:[%s0 + $0x190] sm:$0xff]
  %v65 = vld [vmem:[%s0 + $0x198] sm:$0xff]
  %v66 = vld [vmem:[%s0 + $0x1a0] sm:$0xff]
  %v67 = vld [vmem:[%s0 + $0x1a8] sm:$0xff]
  %v68 = vld [vmem:[%s0 + $0x1b0] sm:$0xff]
  %v69 = vld [vmem:[%s0 + $0x1b8] sm:$0xff]
  %v70 = vld [vmem:[%s0 + $0x1c0] sm:$0xff]
  %v71 = vld [vmem:[%s0 + $0x1c8] sm:$0xff]
  %v72 = vld [vmem:[%s0 + $0x1d0] sm:$0xff]
  %v73 = vld [vmem:[%s0 + $0x1d8] sm:$0xff]
  %v74 = vld [vmem:[%s0 + $0x1e0] sm:$0xff]
  %v75 = vld [vmem:[%s0 + $0x1e8] sm:$0xff]
  %v76 = vld [vmem:[%s0 + $0x1f0] sm:$0xff]
  %v77 = vld [vmem:[%s0 + $0x1f8] sm:$0xff]
  %v78 = vld [vmem:[%s1] sm:$0xff]
  %v79 = vld [vmem:[%s1 + $0x8] sm:$0xff]
  %v80 = vld [vmem:[%s2] sm:$0x1]
  %v82 = vlaneseq
  %v83 = vshrl.u32 %v82, 7
  %v84 = vsub.s32 0, %v83
  %v85 = vrot.slane %v80, %v84
  %vm87 = vcmask 130048
  %v89 = vsel %vm87, %v14, 0
  %v92 = vsel %vm87, %v15, 0
  %v95 = vsel %vm87, %v16, 0
  %v98 = vsel %vm87, %v17, 0
  %v101 = vsel %vm87, %v18, 0
  %v104 = vsel %vm87, %v19, 0
  %v107 = vsel %vm87, %v20, 0
  %v110 = vsel %vm87, %v21, 0
  %v113 = vsel %vm87, %v22, 0
  %v116 = vsel %vm87, %v23, 0
  %v119 = vsel %vm87, %v24, 0
  %v122 = vsel %vm87, %v25, 0
  %v125 = vsel %vm87, %v26, 0
  %v128 = vsel %vm87, %v27, 0
  %v131 = vsel %vm87, %v28, 0
  %v134 = vsel %vm87, %v29, 0
  %v137 = vsel %vm87, %v30, 0
  %v140 = vsel %vm87, %v31, 0
  %v143 = vsel %vm87, %v32, 0
  %v146 = vsel %vm87, %v33, 0
  %v149 = vsel %vm87, %v34, 0
  %v152 = vsel %vm87, %v35, 0
  %v155 = vsel %vm87, %v36, 0
  %v158 = vsel %vm87, %v37, 0
  %v161 = vsel %vm87, %v38, 0
  %v164 = vsel %vm87, %v39, 0
  %v167 = vsel %vm87, %v40, 0
  %v170 = vsel %vm87, %v41, 0
  %v173 = vsel %vm87, %v42, 0
  %v176 = vsel %vm87, %v43, 0
  %v179 = vsel %vm87, %v44, 0
  %v182 = vsel %vm87, %v45, 0
  %v185 = vsel %vm87, %v46, 0
  %v188 = vsel %vm87, %v47, 0
  %v191 = vsel %vm87, %v48, 0
  %v194 = vsel %vm87, %v49, 0
  %v197 = vsel %vm87, %v50, 0
  %v200 = vsel %vm87, %v51, 0
  %v203 = vsel %vm87, %v52, 0
  %v206 = vsel %vm87, %v53, 0
  %v209 = vsel %vm87, %v54, 0
  %v212 = vsel %vm87, %v55, 0
  %v215 = vsel %vm87, %v56, 0
  %v218 = vsel %vm87, %v57, 0
  %v221 = vsel %vm87, %v58, 0
  %v224 = vsel %vm87, %v59, 0
  %v227 = vsel %vm87, %v60, 0
  %v230 = vsel %vm87, %v61, 0
  %v233 = vsel %vm87, %v62, 0
  %v236 = vsel %vm87, %v63, 0
  %v239 = vsel %vm87, %v64, 0
  %v242 = vsel %vm87, %v65, 0
  %v245 = vsel %vm87, %v66, 0
  %v248 = vsel %vm87, %v67, 0
  %v251 = vsel %vm87, %v68, 0
  %v254 = vsel %vm87, %v69, 0
  %v257 = vsel %vm87, %v70, 0
  %v260 = vsel %vm87, %v71, 0
  %v263 = vsel %vm87, %v72, 0
  %v266 = vsel %vm87, %v73, 0
  %v269 = vsel %vm87, %v74, 0
  %v272 = vsel %vm87, %v75, 0
  %v275 = vsel %vm87, %v76, 0
  %v278 = vsel %vm87, %v77, 0
  %280 = vmatprep.subr.mxu0 0.0
  %281 = vmatpush1.msra.mxu0 %v78
  %282 = vmatprep.subr.mxu0 0.0
  %283 = vmatpush1.msra.mxu0 %v79
  %284 = vmatprep.subr.mxu0 0.0
  %285 = vmatpush1.msra.mxu0 0.0
  %286 = vmatprep.subr.mxu0 0.0
  %287 = vmatpush1.msra.mxu0 0.0
  %288 = vmatprep.subr.mxu0 0.0
  %289 = vmatpush1.msra.mxu0 0.0
  %290 = vmatprep.subr.mxu0 0.0
  %291 = vmatpush1.msra.mxu0 0.0
  %292 = vmatprep.subr.mxu0 0.0
  %293 = vmatpush1.msra.mxu0 0.0
  %294 = vmatprep.subr.mxu0 0.0
  %295 = vmatpush1.msra.mxu0 0.0
  %296 = vmatprep.subr.mxu0 0.0
  %297 = vmatpush1.msra.mxu0 0.0
  %298 = vmatprep.subr.mxu0 0.0
  %299 = vmatpush1.msra.mxu0 0.0
  %300 = vmatprep.subr.mxu0 0.0
  %301 = vmatpush1.msra.mxu0 0.0
  %302 = vmatprep.subr.mxu0 0.0
  %303 = vmatpush1.msra.mxu0 0.0
  %304 = vmatprep.subr.mxu0 0.0
  %305 = vmatpush1.msra.mxu0 0.0
  %306 = vmatprep.subr.mxu0 0.0
  %307 = vmatpush1.msra.mxu0 0.0
  %308 = vmatprep.subr.mxu0 0.0
  %309 = vmatpush1.msra.mxu0 0.0
  %310 = vmatprep.subr.mxu0 0.0
  %311 = vmatpush1.msra.mxu0 0.0
  %312 = vmatprep.subr.mxu0 0.0
  %313 = vmatpush1.msra.mxu0 0.0
  %314 = vmatprep.subr.mxu0 0.0
  %315 = vmatpush1.msra.mxu0 0.0
  %316 = vmatprep.subr.mxu0 0.0
  %317 = vmatpush1.msra.mxu0 0.0
  %318 = vmatprep.subr.mxu0 0.0
  %319 = vmatpush1.msra.mxu0 0.0
  %320 = vmatprep.subr.mxu0 0.0
  %321 = vmatpush1.msra.mxu0 0.0
  %322 = vmatprep.subr.mxu0 0.0
  %323 = vmatpush1.msra.mxu0 0.0
  %324 = vmatprep.subr.mxu0 0.0
  %325 = vmatpush1.msra.mxu0 0.0
  %326 = vmatprep.subr.mxu0 0.0
  %327 = vmatpush1.msra.mxu0 0.0
  %328 = vmatprep.subr.mxu0 0.0
  %329 = vmatpush1.msra.mxu0 0.0
  %330 = vmatprep.subr.mxu0 0.0
  %331 = vmatpush1.msra.mxu0 0.0
  %332 = vmatprep.subr.mxu0 0.0
  %333 = vmatpush1.msra.mxu0 0.0
  %334 = vmatprep.subr.mxu0 0.0
  %335 = vmatpush1.msra.mxu0 0.0
  %336 = vmatprep.subr.mxu0 0.0
  %337 = vmatpush1.msra.mxu0 0.0
  %338 = vmatprep.subr.mxu0 0.0
  %339 = vmatpush1.msra.mxu0 0.0
  %340 = vmatprep.subr.mxu0 0.0
  %341 = vmatpush1.msra.mxu0 0.0
  %342 = vmatprep.subr.mxu0 0.0
  %343 = vmatpush1.msra.mxu0 0.0
  %344 = vmatprep.mubr.f32.mxu0 0.0
  %345 = vmatmul.mubr.f32.gmra.mrb[0].mxu0 %v89
  %v346 = vpop.f32.mrb[0].mxu0
  %v347 = vadd.f32 %v85, %v346
  %v348 = vpop.f32.mrb[0].mxu0
  %349 = vmatprep.mubr.f32.mxu0 0.0
  %350 = vmatmul.mubr.f32.gmra.mrb[0].mxu0 %v92
  %v351 = vpop.f32.mrb[0].mxu0
  %v352 = vadd.f32 %v85, %v351
  %v353 = vpop.f32.mrb[0].mxu0
  %354 = vmatprep.mubr.f32.mxu0 0.0
  %355 = vmatmul.mubr.f32.gmra.mrb[0].mxu0 %v95
  %v356 = vpop.f32.mrb[0].mxu0
  %v357 = vadd.f32 %v85, %v356
  %v358 = vpop.f32.mrb[0].mxu0
  %359 = vmatprep.mubr.f32.mxu0 0.0
  %360 = vmatmul.mubr.f32.gmra.mrb[0].mxu0 %v98
  %v361 = vpop.f32.mrb[0].mxu0
  %v362 = vadd.f32 %v85, %v361
  %v363 = vpop.f32.mrb[0].mxu0
  %364 = vmatprep.mubr.f32.mxu0 0.0
  %365 = vmatmul.mubr.f32.gmra.mrb[0].mxu0 %v101
  %v366 = vpop.f32.mrb[0].mxu0
  %v367 = vadd.f32 %v85, %v366
  %v368 = vpop.f32.mrb[0].mxu0
  %369 = vmatprep.mubr.f32.mxu0 0.0
  %370 = vmatmul.mubr.f32.gmra.mrb[0].mxu0 %v104
  %v371 = vpop.f32.mrb[0].mxu0
  %v372 = vadd.f32 %v85, %v371
  %v373 = vpop.f32.mrb[0].mxu0
  %374 = vmatprep.mubr.f32.mxu0 0.0
  %375 = vmatmul.mubr.f32.gmra.mrb[0].mxu0 %v107
  %v376 = vpop.f32.mrb[0].mxu0
  %v377 = vadd.f32 %v85, %v376
  %v378 = vpop.f32.mrb[0].mxu0
  %379 = vmatprep.mubr.f32.mxu0 0.0
  %380 = vmatmul.mubr.f32.gmra.mrb[0].mxu0 %v110
  %v381 = vpop.f32.mrb[0].mxu0
  %v382 = vadd.f32 %v85, %v381
  %v383 = vpop.f32.mrb[0].mxu0
  %384 = vmatprep.mubr.f32.mxu0 0.0
  %385 = vmatmul.mubr.f32.gmra.mrb[0].mxu0 %v113
  %v386 = vpop.f32.mrb[0].mxu0
  %v387 = vadd.f32 %v85, %v386
  %v388 = vpop.f32.mrb[0].mxu0
  %389 = vmatprep.mubr.f32.mxu0 0.0
  %390 = vmatmul.mubr.f32.gmra.mrb[0].mxu0 %v116
  %v391 = vpop.f32.mrb[0].mxu0
  %v392 = vadd.f32 %v85, %v391
  %v393 = vpop.f32.mrb[0].mxu0
  %394 = vmatprep.mubr.f32.mxu0 0.0
  %395 = vmatmul.mubr.f32.gmra.mrb[0].mxu0 %v119
  %v396 = vpop.f32.mrb[0].mxu0
  %v397 = vadd.f32 %v85, %v396
  %v398 = vpop.f32.mrb[0].mxu0
  %399 = vmatprep.mubr.f32.mxu0 0.0
  %400 = vmatmul.mubr.f32.gmra.mrb[0].mxu0 %v122
  %v401 = vpop.f32.mrb[0].mxu0
  %v402 = vadd.f32 %v85, %v401
  %v403 = vpop.f32.mrb[0].mxu0
  %404 = vmatprep.mubr.f32.mxu0 0.0
  %405 = vmatmul.mubr.f32.gmra.mrb[0].mxu0 %v125
  %v406 = vpop.f32.mrb[0].mxu0
  %v407 = vadd.f32 %v85, %v406
  %v408 = vpop.f32.mrb[0].mxu0
  %409 = vmatprep.mubr.f32.mxu0 0.0
  %410 = vmatmul.mubr.f32.gmra.mrb[0].mxu0 %v128
  %v411 = vpop.f32.mrb[0].mxu0
  %v412 = vadd.f32 %v85, %v411
  %v413 = vpop.f32.mrb[0].mxu0
  %414 = vmatprep.mubr.f32.mxu0 0.0
  %415 = vmatmul.mubr.f32.gmra.mrb[0].mxu0 %v131
  %v416 = vpop.f32.mrb[0].mxu0
  %v417 = vadd.f32 %v85, %v416
  %v418 = vpop.f32.mrb[0].mxu0
  %419 = vmatprep.mubr.f32.mxu0 0.0
  %420 = vmatmul.mubr.f32.gmra.mrb[0].mxu0 %v134
  %v421 = vpop.f32.mrb[0].mxu0
  %v422 = vadd.f32 %v85, %v421
  %v423 = vpop.f32.mrb[0].mxu0
  %424 = vmatprep.mubr.f32.mxu0 0.0
  %425 = vmatmul.mubr.f32.gmra.mrb[0].mxu0 %v137
  %v426 = vpop.f32.mrb[0].mxu0
  %v427 = vadd.f32 %v85, %v426
  %v428 = vpop.f32.mrb[0].mxu0
  %429 = vmatprep.mubr.f32.mxu0 0.0
  %430 = vmatmul.mubr.f32.gmra.mrb[0].mxu0 %v140
  %v431 = vpop.f32.mrb[0].mxu0
  %v432 = vadd.f32 %v85, %v431
  %v433 = vpop.f32.mrb[0].mxu0
  %434 = vmatprep.mubr.f32.mxu0 0.0
  %435 = vmatmul.mubr.f32.gmra.mrb[0].mxu0 %v143
  %v436 = vpop.f32.mrb[0].mxu0
  %v437 = vadd.f32 %v85, %v436
  %v438 = vpop.f32.mrb[0].mxu0
  %439 = vmatprep.mubr.f32.mxu0 0.0
  %440 = vmatmul.mubr.f32.gmra.mrb[0].mxu0 %v146
  %v441 = vpop.f32.mrb[0].mxu0
  %v442 = vadd.f32 %v85, %v441
  %v443 = vpop.f32.mrb[0].mxu0
  %444 = vmatprep.mubr.f32.mxu0 0.0
  %445 = vmatmul.mubr.f32.gmra.mrb[0].mxu0 %v149
  %v446 = vpop.f32.mrb[0].mxu0
  %v447 = vadd.f32 %v85, %v446
  %v448 = vpop.f32.mrb[0].mxu0
  %449 = vmatprep.mubr.f32.mxu0 0.0
  %450 = vmatmul.mubr.f32.gmra.mrb[0].mxu0 %v152
  %v451 = vpop.f32.mrb[0].mxu0
  %v452 = vadd.f32 %v85, %v451
  %v453 = vpop.f32.mrb[0].mxu0
  %454 = vmatprep.mubr.f32.mxu0 0.0
  %455 = vmatmul.mubr.f32.gmra.mrb[0].mxu0 %v155
  %v456 = vpop.f32.mrb[0].mxu0
  %v457 = vadd.f32 %v85, %v456
  %v458 = vpop.f32.mrb[0].mxu0
  %459 = vmatprep.mubr.f32.mxu0 0.0
  %460 = vmatmul.mubr.f32.gmra.mrb[0].mxu0 %v158
  %v461 = vpop.f32.mrb[0].mxu0
  %v462 = vadd.f32 %v85, %v461
  %v463 = vpop.f32.mrb[0].mxu0
  %464 = vmatprep.mubr.f32.mxu0 0.0
  %465 = vmatmul.mubr.f32.gmra.mrb[0].mxu0 %v161
  %v466 = vpop.f32.mrb[0].mxu0
  %v467 = vadd.f32 %v85, %v466
  %v468 = vpop.f32.mrb[0].mxu0
  %469 = vmatprep.mubr.f32.mxu0 0.0
  %470 = vmatmul.mubr.f32.gmra.mrb[0].mxu0 %v164
  %v471 = vpop.f32.mrb[0].mxu0
  %v472 = vadd.f32 %v85, %v471
  %v473 = vpop.f32.mrb[0].mxu0
  %474 = vmatprep.mubr.f32.mxu0 0.0
  %475 = vmatmul.mubr.f32.gmra.mrb[0].mxu0 %v167
  %v476 = vpop.f32.mrb[0].mxu0
  %v477 = vadd.f32 %v85, %v476
  %v478 = vpop.f32.mrb[0].mxu0
  %479 = vmatprep.mubr.f32.mxu0 0.0
  %480 = vmatmul.mubr.f32.gmra.mrb[0].mxu0 %v170
  %v481 = vpop.f32.mrb[0].mxu0
  %v482 = vadd.f32 %v85, %v481
  %v483 = vpop.f32.mrb[0].mxu0
  %484 = vmatprep.mubr.f32.mxu0 0.0
  %485 = vmatmul.mubr.f32.gmra.mrb[0].mxu0 %v173
  %v486 = vpop.f32.mrb[0].mxu0
  %v487 = vadd.f32 %v85, %v486
  %v488 = vpop.f32.mrb[0].mxu0
  %489 = vmatprep.mubr.f32.mxu0 0.0
  %490 = vmatmul.mubr.f32.gmra.mrb[0].mxu0 %v176
  %v491 = vpop.f32.mrb[0].mxu0
  %v492 = vadd.f32 %v85, %v491
  %v493 = vpop.f32.mrb[0].mxu0
  %494 = vmatprep.mubr.f32.mxu0 0.0
  %495 = vmatmul.mubr.f32.gmra.mrb[0].mxu0 %v179
  %v496 = vpop.f32.mrb[0].mxu0
  %v497 = vadd.f32 %v85, %v496
  %v498 = vpop.f32.mrb[0].mxu0
  %499 = vmatprep.mubr.f32.mxu0 0.0
  %500 = vmatmul.mubr.f32.gmra.mrb[0].mxu0 %v182
  %v501 = vpop.f32.mrb[0].mxu0
  %v502 = vadd.f32 %v85, %v501
  %v503 = vpop.f32.mrb[0].mxu0
  %504 = vmatprep.mubr.f32.mxu0 0.0
  %505 = vmatmul.mubr.f32.gmra.mrb[0].mxu0 %v185
  %v506 = vpop.f32.mrb[0].mxu0
  %v507 = vadd.f32 %v85, %v506
  %v508 = vpop.f32.mrb[0].mxu0
  %509 = vmatprep.mubr.f32.mxu0 0.0
  %510 = vmatmul.mubr.f32.gmra.mrb[0].mxu0 %v188
  %v511 = vpop.f32.mrb[0].mxu0
  %v512 = vadd.f32 %v85, %v511
  %v513 = vpop.f32.mrb[0].mxu0
  %514 = vmatprep.mubr.f32.mxu0 0.0
  %515 = vmatmul.mubr.f32.gmra.mrb[0].mxu0 %v191
  %v516 = vpop.f32.mrb[0].mxu0
  %v517 = vadd.f32 %v85, %v516
  %v518 = vpop.f32.mrb[0].mxu0
  %519 = vmatprep.mubr.f32.mxu0 0.0
  %520 = vmatmul.mubr.f32.gmra.mrb[0].mxu0 %v194
  %v521 = vpop.f32.mrb[0].mxu0
  %v522 = vadd.f32 %v85, %v521
  %v523 = vpop.f32.mrb[0].mxu0
  %524 = vmatprep.mubr.f32.mxu0 0.0
  %525 = vmatmul.mubr.f32.gmra.mrb[0].mxu0 %v197
  %v526 = vpop.f32.mrb[0].mxu0
  %v527 = vadd.f32 %v85, %v526
  %v528 = vpop.f32.mrb[0].mxu0
  %529 = vmatprep.mubr.f32.mxu0 0.0
  %530 = vmatmul.mubr.f32.gmra.mrb[0].mxu0 %v200
  %v531 = vpop.f32.mrb[0].mxu0
  %v532 = vadd.f32 %v85, %v531
  %v533 = vpop.f32.mrb[0].mxu0
  %534 = vmatprep.mubr.f32.mxu0 0.0
  %535 = vmatmul.mubr.f32.gmra.mrb[0].mxu0 %v203
  %v536 = vpop.f32.mrb[0].mxu0
  %v537 = vadd.f32 %v85, %v536
  %v538 = vpop.f32.mrb[0].mxu0
  %539 = vmatprep.mubr.f32.mxu0 0.0
  %540 = vmatmul.mubr.f32.gmra.mrb[0].mxu0 %v206
  %v541 = vpop.f32.mrb[0].mxu0
  %v542 = vadd.f32 %v85, %v541
  %v543 = vpop.f32.mrb[0].mxu0
  %544 = vmatprep.mubr.f32.mxu0 0.0
  %545 = vmatmul.mubr.f32.gmra.mrb[0].mxu0 %v209
  %v546 = vpop.f32.mrb[0].mxu0
  %v547 = vadd.f32 %v85, %v546
  %v548 = vpop.f32.mrb[0].mxu0
  %549 = vmatprep.mubr.f32.mxu0 0.0
  %550 = vmatmul.mubr.f32.gmra.mrb[0].mxu0 %v212
  %v551 = vpop.f32.mrb[0].mxu0
  %v552 = vadd.f32 %v85, %v551
  %v553 = vpop.f32.mrb[0].mxu0
  %554 = vmatprep.mubr.f32.mxu0 0.0
  %555 = vmatmul.mubr.f32.gmra.mrb[0].mxu0 %v215
  %v556 = vpop.f32.mrb[0].mxu0
  %v557 = vadd.f32 %v85, %v556
  %v558 = vpop.f32.mrb[0].mxu0
  %559 = vmatprep.mubr.f32.mxu0 0.0
  %560 = vmatmul.mubr.f32.gmra.mrb[0].mxu0 %v218
  %v561 = vpop.f32.mrb[0].mxu0
  %v562 = vadd.f32 %v85, %v561
  %v563 = vpop.f32.mrb[0].mxu0
  %564 = vmatprep.mubr.f32.mxu0 0.0
  %565 = vmatmul.mubr.f32.gmra.mrb[0].mxu0 %v221
  %v566 = vpop.f32.mrb[0].mxu0
  %v567 = vadd.f32 %v85, %v566
  %v568 = vpop.f32.mrb[0].mxu0
  %569 = vmatprep.mubr.f32.mxu0 0.0
  %570 = vmatmul.mubr.f32.gmra.mrb[0].mxu0 %v224
  %v571 = vpop.f32.mrb[0].mxu0
  %v572 = vadd.f32 %v85, %v571
  %v573 = vpop.f32.mrb[0].mxu0
  %574 = vmatprep.mubr.f32.mxu0 0.0
  %575 = vmatmul.mubr.f32.gmra.mrb[0].mxu0 %v227
  %v576 = vpop.f32.mrb[0].mxu0
  %v577 = vadd.f32 %v85, %v576
  %v578 = vpop.f32.mrb[0].mxu0
  %579 = vmatprep.mubr.f32.mxu0 0.0
  %580 = vmatmul.mubr.f32.gmra.mrb[0].mxu0 %v230
  %v581 = vpop.f32.mrb[0].mxu0
  %v582 = vadd.f32 %v85, %v581
  %v583 = vpop.f32.mrb[0].mxu0
  %584 = vmatprep.mubr.f32.mxu0 0.0
  %585 = vmatmul.mubr.f32.gmra.mrb[0].mxu0 %v233
  %v586 = vpop.f32.mrb[0].mxu0
  %v587 = vadd.f32 %v85, %v586
  %v588 = vpop.f32.mrb[0].mxu0
  %589 = vmatprep.mubr.f32.mxu0 0.0
  %590 = vmatmul.mubr.f32.gmra.mrb[0].mxu0 %v236
  %v591 = vpop.f32.mrb[0].mxu0
  %v592 = vadd.f32 %v85, %v591
  %v593 = vpop.f32.mrb[0].mxu0
  %594 = vmatprep.mubr.f32.mxu0 0.0
  %595 = vmatmul.mubr.f32.gmra.mrb[0].mxu0 %v239
  %v596 = vpop.f32.mrb[0].mxu0
  %v597 = vadd.f32 %v85, %v596
  %v598 = vpop.f32.mrb[0].mxu0
  %599 = vmatprep.mubr.f32.mxu0 0.0
  %600 = vmatmul.mubr.f32.gmra.mrb[0].mxu0 %v242
  %v601 = vpop.f32.mrb[0].mxu0
  %v602 = vadd.f32 %v85, %v601
  %v603 = vpop.f32.mrb[0].mxu0
  %604 = vmatprep.mubr.f32.mxu0 0.0
  %605 = vmatmul.mubr.f32.gmra.mrb[0].mxu0 %v245
  %v606 = vpop.f32.mrb[0].mxu0
  %v607 = vadd.f32 %v85, %v606
  %v608 = vpop.f32.mrb[0].mxu0
  %609 = vmatprep.mubr.f32.mxu0 0.0
  %610 = vmatmul.mubr.f32.gmra.mrb[0].mxu0 %v248
  %v611 = vpop.f32.mrb[0].mxu0
  %v612 = vadd.f32 %v85, %v611
  %v613 = vpop.f32.mrb[0].mxu0
  %614 = vmatprep.mubr.f32.mxu0 0.0
  %615 = vmatmul.mubr.f32.gmra.mrb[0].mxu0 %v251
  %v616 = vpop.f32.mrb[0].mxu0
  %v617 = vadd.f32 %v85, %v616
  %v618 = vpop.f32.mrb[0].mxu0
  %619 = vmatprep.mubr.f32.mxu0 0.0
  %620 = vmatmul.mubr.f32.gmra.mrb[0].mxu0 %v254
  %v621 = vpop.f32.mrb[0].mxu0
  %v622 = vadd.f32 %v85, %v621
  %v623 = vpop.f32.mrb[0].mxu0
  %624 = vmatprep.mubr.f32.mxu0 0.0
  %625 = vmatmul.mubr.f32.gmra.mrb[0].mxu0 %v257
  %v626 = vpop.f32.mrb[0].mxu0
  %v627 = vadd.f32 %v85, %v626
  %v628 = vpop.f32.mrb[0].mxu0
  %629 = vmatprep.mubr.f32.mxu0 0.0
  %630 = vmatmul.mubr.f32.gmra.mrb[0].mxu0 %v260
  %v631 = vpop.f32.mrb[0].mxu0
  %v632 = vadd.f32 %v85, %v631
  %v633 = vpop.f32.mrb[0].mxu0
  %634 = vmatprep.mubr.f32.mxu0 0.0
  %635 = vmatmul.mubr.f32.gmra.mrb[0].mxu0 %v263
  %v636 = vpop.f32.mrb[0].mxu0
  %v637 = vadd.f32 %v85, %v636
  %v638 = vpop.f32.mrb[0].mxu0
  %639 = vmatprep.mubr.f32.mxu0 0.0
  %640 = vmatmul.mubr.f32.gmra.mrb[0].mxu0 %v266
  %v641 = vpop.f32.mrb[0].mxu0
  %v642 = vadd.f32 %v85, %v641
  %v643 = vpop.f32.mrb[0].mxu0
  %644 = vmatprep.mubr.f32.mxu0 0.0
  %645 = vmatmul.mubr.f32.gmra.mrb[0].mxu0 %v269
  %v646 = vpop.f32.mrb[0].mxu0
  %v647 = vadd.f32 %v85, %v646
  %v648 = vpop.f32.mrb[0].mxu0
  %649 = vmatprep.mubr.f32.mxu0 0.0
  %650 = vmatmul.mubr.f32.gmra.mrb[0].mxu0 %v272
  %v651 = vpop.f32.mrb[0].mxu0
  %v652 = vadd.f32 %v85, %v651
  %v653 = vpop.f32.mrb[0].mxu0
  %654 = vmatprep.mubr.f32.mxu0 0.0
  %655 = vmatmul.mubr.f32.gmra.mrb[0].mxu0 %v275
  %v656 = vpop.f32.mrb[0].mxu0
  %v657 = vadd.f32 %v85, %v656
  %v658 = vpop.f32.mrb[0].mxu0
  %659 = vmatprep.mubr.f32.mxu0 0.0
  %660 = vmatmul.mubr.f32.gmra.mrb[0].mxu0 %v278
  %v661 = vpop.f32.mrb[0].mxu0
  %v662 = vadd.f32 %v85, %v661
  %v663 = vpop.f32.mrb[0].mxu0
  %664 = vdwg.mxu0
  %v665 = vxor.u32 %v347, 2147483648
  %v666 = vxor.u32 %v352, 2147483648
  %v667 = vxor.u32 %v357, 2147483648
  %v668 = vxor.u32 %v362, 2147483648
  %v669 = vxor.u32 %v367, 2147483648
  %v670 = vxor.u32 %v372, 2147483648
  %v671 = vxor.u32 %v377, 2147483648
  %v672 = vxor.u32 %v382, 2147483648
  %v673 = vxor.u32 %v387, 2147483648
  %v674 = vxor.u32 %v392, 2147483648
  %v675 = vxor.u32 %v397, 2147483648
  %v676 = vxor.u32 %v402, 2147483648
  %v677 = vxor.u32 %v407, 2147483648
  %v678 = vxor.u32 %v412, 2147483648
  %v679 = vxor.u32 %v417, 2147483648
  %v680 = vxor.u32 %v422, 2147483648
  %v681 = vxor.u32 %v427, 2147483648
  %v682 = vxor.u32 %v432, 2147483648
  %v683 = vxor.u32 %v437, 2147483648
  %v684 = vxor.u32 %v442, 2147483648
  %v685 = vxor.u32 %v447, 2147483648
  %v686 = vxor.u32 %v452, 2147483648
  %v687 = vxor.u32 %v457, 2147483648
  %v688 = vxor.u32 %v462, 2147483648
  %v689 = vxor.u32 %v467, 2147483648
  %v690 = vxor.u32 %v472, 2147483648
  %v691 = vxor.u32 %v477, 2147483648
  %v692 = vxor.u32 %v482, 2147483648
  %v693 = vxor.u32 %v487, 2147483648
  %v694 = vxor.u32 %v492, 2147483648
  %v695 = vxor.u32 %v497, 2147483648
  %v696 = vxor.u32 %v502, 2147483648
  %v697 = vxor.u32 %v507, 2147483648
  %v698 = vxor.u32 %v512, 2147483648
  %v699 = vxor.u32 %v517, 2147483648
  %v700 = vxor.u32 %v522, 2147483648
  %v701 = vxor.u32 %v527, 2147483648
  %v702 = vxor.u32 %v532, 2147483648
  %v703 = vxor.u32 %v537, 2147483648
  %v704 = vxor.u32 %v542, 2147483648
  %v705 = vxor.u32 %v547, 2147483648
  %v706 = vxor.u32 %v552, 2147483648
  %v707 = vxor.u32 %v557, 2147483648
  %v708 = vxor.u32 %v562, 2147483648
  %v709 = vxor.u32 %v567, 2147483648
  %v710 = vxor.u32 %v572, 2147483648
  %v711 = vxor.u32 %v577, 2147483648
  %v712 = vxor.u32 %v582, 2147483648
  %v713 = vxor.u32 %v587, 2147483648
  %v714 = vxor.u32 %v592, 2147483648
  %v715 = vxor.u32 %v597, 2147483648
  %v716 = vxor.u32 %v602, 2147483648
  %v717 = vxor.u32 %v607, 2147483648
  %v718 = vxor.u32 %v612, 2147483648
  %v719 = vxor.u32 %v617, 2147483648
  %v720 = vxor.u32 %v622, 2147483648
  %v721 = vxor.u32 %v627, 2147483648
  %v722 = vxor.u32 %v632, 2147483648
  %v723 = vxor.u32 %v637, 2147483648
  %v724 = vxor.u32 %v642, 2147483648
  %v725 = vxor.u32 %v647, 2147483648
  %v726 = vxor.u32 %v652, 2147483648
  %v727 = vxor.u32 %v657, 2147483648
  %v728 = vxor.u32 %v662, 2147483648
  %v729 = vmul.f32 %v665, 1.442695
  %v730 = vpow.pop %v729
  %v731 = vmul.f32 %v666, 1.442695
  %v732 = vpow.pop %v731
  %v733 = vmul.f32 %v667, 1.442695
  %v734 = vpow.pop %v733
  %v735 = vmul.f32 %v668, 1.442695
  %v736 = vpow.pop %v735
  %v737 = vmul.f32 %v669, 1.442695
  %v738 = vpow.pop %v737
  %v739 = vmul.f32 %v670, 1.442695
  %v740 = vpow.pop %v739
  %v741 = vmul.f32 %v671, 1.442695
  %v742 = vpow.pop %v741
  %v743 = vmul.f32 %v672, 1.442695
  %v744 = vpow.pop %v743
  %v745 = vmul.f32 %v673, 1.442695
  %v746 = vpow.pop %v745
  %v747 = vmul.f32 %v674, 1.442695
  %v748 = vpow.pop %v747
  %v749 = vmul.f32 %v675, 1.442695
  %v750 = vpow.pop %v749
  %v751 = vmul.f32 %v676, 1.442695
  %v752 = vpow.pop %v751
  %v753 = vmul.f32 %v677, 1.442695
  %v754 = vpow.pop %v753
  %v755 = vmul.f32 %v678, 1.442695
  %v756 = vpow.pop %v755
  %v757 = vmul.f32 %v679, 1.442695
  %v758 = vpow.pop %v757
  %v759 = vmul.f32 %v680, 1.442695
  %v760 = vpow.pop %v759
  %v761 = vmul.f32 %v681, 1.442695
  %v762 = vpow.pop %v761
  %v763 = vmul.f32 %v682, 1.442695
  %v764 = vpow.pop %v763
  %v765 = vmul.f32 %v683, 1.442695
  %v766 = vpow.pop %v765
  %v767 = vmul.f32 %v684, 1.442695
  %v768 = vpow.pop %v767
  %v769 = vmul.f32 %v685, 1.442695
  %v770 = vpow.pop %v769
  %v771 = vmul.f32 %v686, 1.442695
  %v772 = vpow.pop %v771
  %v773 = vmul.f32 %v687, 1.442695
  %v774 = vpow.pop %v773
  %v775 = vmul.f32 %v688, 1.442695
  %v776 = vpow.pop %v775
  %v777 = vmul.f32 %v689, 1.442695
  %v778 = vpow.pop %v777
  %v779 = vmul.f32 %v690, 1.442695
  %v780 = vpow.pop %v779
  %v781 = vmul.f32 %v691, 1.442695
  %v782 = vpow.pop %v781
  %v783 = vmul.f32 %v692, 1.442695
  %v784 = vpow.pop %v783
  %v785 = vmul.f32 %v693, 1.442695
  %v786 = vpow.pop %v785
  %v787 = vmul.f32 %v694, 1.442695
  %v788 = vpow.pop %v787
  %v789 = vmul.f32 %v695, 1.442695
  %v790 = vpow.pop %v789
  %v791 = vmul.f32 %v696, 1.442695
  %v792 = vpow.pop %v791
  %v793 = vmul.f32 %v697, 1.442695
  %v794 = vpow.pop %v793
  %v795 = vmul.f32 %v698, 1.442695
  %v796 = vpow.pop %v795
  %v797 = vmul.f32 %v699, 1.442695
  %v798 = vpow.pop %v797
  %v799 = vmul.f32 %v700, 1.442695
  %v800 = vpow.pop %v799
  %v801 = vmul.f32 %v701, 1.442695
  %v802 = vpow.pop %v801
  %v803 = vmul.f32 %v702, 1.442695
  %v804 = vpow.pop %v803
  %v805 = vmul.f32 %v703, 1.442695
  %v806 = vpow.pop %v805
  %v807 = vmul.f32 %v704, 1.442695
  %v808 = vpow.pop %v807
  %v809 = vmul.f32 %v705, 1.442695
  %v810 = vpow.pop %v809
  %v811 = vmul.f32 %v706, 1.442695
  %v812 = vpow.pop %v811
  %v813 = vmul.f32 %v707, 1.442695
  %v814 = vpow.pop %v813
  %v815 = vmul.f32 %v708, 1.442695
  %v816 = vpow.pop %v815
  %v817 = vmul.f32 %v709, 1.442695
  %v818 = vpow.pop %v817
  %v819 = vmul.f32 %v710, 1.442695
  %v820 = vpow.pop %v819
  %v821 = vmul.f32 %v711, 1.442695
  %v822 = vpow.pop %v821
  %v823 = vmul.f32 %v712, 1.442695
  %v824 = vpow.pop %v823
  %v825 = vmul.f32 %v713, 1.442695
  %v826 = vpow.pop %v825
  %v827 = vmul.f32 %v714, 1.442695
  %v828 = vpow.pop %v827
  %v829 = vmul.f32 %v715, 1.442695
  %v830 = vpow.pop %v829
  %v831 = vmul.f32 %v716, 1.442695
  %v832 = vpow.pop %v831
  %v833 = vmul.f32 %v717, 1.442695
  %v834 = vpow.pop %v833
  %v835 = vmul.f32 %v718, 1.442695
  %v836 = vpow.pop %v835
  %v837 = vmul.f32 %v719, 1.442695
  %v838 = vpow.pop %v837
  %v839 = vmul.f32 %v720, 1.442695
  %v840 = vpow.pop %v839
  %v841 = vmul.f32 %v721, 1.442695
  %v842 = vpow.pop %v841
  %v843 = vmul.f32 %v722, 1.442695
  %v844 = vpow.pop %v843
  %v845 = vmul.f32 %v723, 1.442695
  %v846 = vpow.pop %v845
  %v847 = vmul.f32 %v724, 1.442695
  %v848 = vpow.pop %v847
  %v849 = vmul.f32 %v725, 1.442695
  %v850 = vpow.pop %v849
  %v851 = vmul.f32 %v726, 1.442695
  %v852 = vpow.pop %v851
  %v853 = vmul.f32 %v727, 1.442695
  %v854 = vpow.pop %v853
  %v855 = vmul.f32 %v728, 1.442695
  %v856 = vpow.pop %v855
  %v857 = vadd.f32 %v730, 1.0
  %v858 = vadd.f32 %v732, 1.0
  %v859 = vadd.f32 %v734, 1.0
  %v860 = vadd.f32 %v736, 1.0
  %v861 = vadd.f32 %v738, 1.0
  %v862 = vadd.f32 %v740, 1.0
  %v863 = vadd.f32 %v742, 1.0
  %v864 = vadd.f32 %v744, 1.0
  %v865 = vadd.f32 %v746, 1.0
  %v866 = vadd.f32 %v748, 1.0
  %v867 = vadd.f32 %v750, 1.0
  %v868 = vadd.f32 %v752, 1.0
  %v869 = vadd.f32 %v754, 1.0
  %v870 = vadd.f32 %v756, 1.0
  %v871 = vadd.f32 %v758, 1.0
  %v872 = vadd.f32 %v760, 1.0
  %v873 = vadd.f32 %v762, 1.0
  %v874 = vadd.f32 %v764, 1.0
  %v875 = vadd.f32 %v766, 1.0
  %v876 = vadd.f32 %v768, 1.0
  %v877 = vadd.f32 %v770, 1.0
  %v878 = vadd.f32 %v772, 1.0
  %v879 = vadd.f32 %v774, 1.0
  %v880 = vadd.f32 %v776, 1.0
  %v881 = vadd.f32 %v778, 1.0
  %v882 = vadd.f32 %v780, 1.0
  %v883 = vadd.f32 %v782, 1.0
  %v884 = vadd.f32 %v784, 1.0
  %v885 = vadd.f32 %v786, 1.0
  %v886 = vadd.f32 %v788, 1.0
  %v887 = vadd.f32 %v790, 1.0
  %v888 = vadd.f32 %v792, 1.0
  %v889 = vadd.f32 %v794, 1.0
  %v890 = vadd.f32 %v796, 1.0
  %v891 = vadd.f32 %v798, 1.0
  %v892 = vadd.f32 %v800, 1.0
  %v893 = vadd.f32 %v802, 1.0
  %v894 = vadd.f32 %v804, 1.0
  %v895 = vadd.f32 %v806, 1.0
  %v896 = vadd.f32 %v808, 1.0
  %v897 = vadd.f32 %v810, 1.0
  %v898 = vadd.f32 %v812, 1.0
  %v899 = vadd.f32 %v814, 1.0
  %v900 = vadd.f32 %v816, 1.0
  %v901 = vadd.f32 %v818, 1.0
  %v902 = vadd.f32 %v820, 1.0
  %v903 = vadd.f32 %v822, 1.0
  %v904 = vadd.f32 %v824, 1.0
  %v905 = vadd.f32 %v826, 1.0
  %v906 = vadd.f32 %v828, 1.0
  %v907 = vadd.f32 %v830, 1.0
  %v908 = vadd.f32 %v832, 1.0
  %v909 = vadd.f32 %v834, 1.0
  %v910 = vadd.f32 %v836, 1.0
  %v911 = vadd.f32 %v838, 1.0
  %v912 = vadd.f32 %v840, 1.0
  %v913 = vadd.f32 %v842, 1.0
  %v914 = vadd.f32 %v844, 1.0
  %v915 = vadd.f32 %v846, 1.0
  %v916 = vadd.f32 %v848, 1.0
  %v917 = vadd.f32 %v850, 1.0
  %v918 = vadd.f32 %v852, 1.0
  %v919 = vadd.f32 %v854, 1.0
  %v920 = vadd.f32 %v856, 1.0
  %v921 = vrcp.pop %v857
  %v922 = vmul.f32 1.0, %v921
  %v923 = vrcp.pop %v858
  %v924 = vmul.f32 1.0, %v923
  %v925 = vrcp.pop %v859
  %v926 = vmul.f32 1.0, %v925
  %v927 = vrcp.pop %v860
  %v928 = vmul.f32 1.0, %v927
  %v929 = vrcp.pop %v861
  %v930 = vmul.f32 1.0, %v929
  %v931 = vrcp.pop %v862
  %v932 = vmul.f32 1.0, %v931
  %v933 = vrcp.pop %v863
  %v934 = vmul.f32 1.0, %v933
  %v935 = vrcp.pop %v864
  %v936 = vmul.f32 1.0, %v935
  %v937 = vrcp.pop %v865
  %v938 = vmul.f32 1.0, %v937
  %v939 = vrcp.pop %v866
  %v940 = vmul.f32 1.0, %v939
  %v941 = vrcp.pop %v867
  %v942 = vmul.f32 1.0, %v941
  %v943 = vrcp.pop %v868
  %v944 = vmul.f32 1.0, %v943
  %v945 = vrcp.pop %v869
  %v946 = vmul.f32 1.0, %v945
  %v947 = vrcp.pop %v870
  %v948 = vmul.f32 1.0, %v947
  %v949 = vrcp.pop %v871
  %v950 = vmul.f32 1.0, %v949
  %v951 = vrcp.pop %v872
  %v952 = vmul.f32 1.0, %v951
  %v953 = vrcp.pop %v873
  %v954 = vmul.f32 1.0, %v953
  %v955 = vrcp.pop %v874
  %v956 = vmul.f32 1.0, %v955
  %v957 = vrcp.pop %v875
  %v958 = vmul.f32 1.0, %v957
  %v959 = vrcp.pop %v876
  %v960 = vmul.f32 1.0, %v959
  %v961 = vrcp.pop %v877
  %v962 = vmul.f32 1.0, %v961
  %v963 = vrcp.pop %v878
  %v964 = vmul.f32 1.0, %v963
  %v965 = vrcp.pop %v879
  %v966 = vmul.f32 1.0, %v965
  %v967 = vrcp.pop %v880
  %v968 = vmul.f32 1.0, %v967
  %v969 = vrcp.pop %v881
  %v970 = vmul.f32 1.0, %v969
  %v971 = vrcp.pop %v882
  %v972 = vmul.f32 1.0, %v971
  %v973 = vrcp.pop %v883
  %v974 = vmul.f32 1.0, %v973
  %v975 = vrcp.pop %v884
  %v976 = vmul.f32 1.0, %v975
  %v977 = vrcp.pop %v885
  %v978 = vmul.f32 1.0, %v977
  %v979 = vrcp.pop %v886
  %v980 = vmul.f32 1.0, %v979
  %v981 = vrcp.pop %v887
  %v982 = vmul.f32 1.0, %v981
  %v983 = vrcp.pop %v888
  %v984 = vmul.f32 1.0, %v983
  %v985 = vrcp.pop %v889
  %v986 = vmul.f32 1.0, %v985
  %v987 = vrcp.pop %v890
  %v988 = vmul.f32 1.0, %v987
  %v989 = vrcp.pop %v891
  %v990 = vmul.f32 1.0, %v989
  %v991 = vrcp.pop %v892
  %v992 = vmul.f32 1.0, %v991
  %v993 = vrcp.pop %v893
  %v994 = vmul.f32 1.0, %v993
  %v995 = vrcp.pop %v894
  %v996 = vmul.f32 1.0, %v995
  %v997 = vrcp.pop %v895
  %v998 = vmul.f32 1.0, %v997
  %v999 = vrcp.pop %v896
  %v1000 = vmul.f32 1.0, %v999
  %v1001 = vrcp.pop %v897
  %v1002 = vmul.f32 1.0, %v1001
  %v1003 = vrcp.pop %v898
  %v1004 = vmul.f32 1.0, %v1003
  %v1005 = vrcp.pop %v899
  %v1006 = vmul.f32 1.0, %v1005
  %v1007 = vrcp.pop %v900
  %v1008 = vmul.f32 1.0, %v1007
  %v1009 = vrcp.pop %v901
  %v1010 = vmul.f32 1.0, %v1009
  %v1011 = vrcp.pop %v902
  %v1012 = vmul.f32 1.0, %v1011
  %v1013 = vrcp.pop %v903
  %v1014 = vmul.f32 1.0, %v1013
  %v1015 = vrcp.pop %v904
  %v1016 = vmul.f32 1.0, %v1015
  %v1017 = vrcp.pop %v905
  %v1018 = vmul.f32 1.0, %v1017
  %v1019 = vrcp.pop %v906
  %v1020 = vmul.f32 1.0, %v1019
  %v1021 = vrcp.pop %v907
  %v1022 = vmul.f32 1.0, %v1021
  %v1023 = vrcp.pop %v908
  %v1024 = vmul.f32 1.0, %v1023
  %v1025 = vrcp.pop %v909
  %v1026 = vmul.f32 1.0, %v1025
  %v1027 = vrcp.pop %v910
  %v1028 = vmul.f32 1.0, %v1027
  %v1029 = vrcp.pop %v911
  %v1030 = vmul.f32 1.0, %v1029
  %v1031 = vrcp.pop %v912
  %v1032 = vmul.f32 1.0, %v1031
  %v1033 = vrcp.pop %v913
  %v1034 = vmul.f32 1.0, %v1033
  %v1035 = vrcp.pop %v914
  %v1036 = vmul.f32 1.0, %v1035
  %v1037 = vrcp.pop %v915
  %v1038 = vmul.f32 1.0, %v1037
  %v1039 = vrcp.pop %v916
  %v1040 = vmul.f32 1.0, %v1039
  %v1041 = vrcp.pop %v917
  %v1042 = vmul.f32 1.0, %v1041
  %v1043 = vrcp.pop %v918
  %v1044 = vmul.f32 1.0, %v1043
  %v1045 = vrcp.pop %v919
  %v1046 = vmul.f32 1.0, %v1045
  %v1047 = vrcp.pop %v920
  %v1048 = vmul.f32 1.0, %v1047
  %v1049 = vmul.f32 %v347, %v922
  %v1050 = vmul.f32 %v352, %v924
  %v1051 = vmul.f32 %v357, %v926
  %v1052 = vmul.f32 %v362, %v928
  %v1053 = vmul.f32 %v367, %v930
  %v1054 = vmul.f32 %v372, %v932
  %v1055 = vmul.f32 %v377, %v934
  %v1056 = vmul.f32 %v382, %v936
  %v1057 = vmul.f32 %v387, %v938
  %v1058 = vmul.f32 %v392, %v940
  %v1059 = vmul.f32 %v397, %v942
  %v1060 = vmul.f32 %v402, %v944
  %v1061 = vmul.f32 %v407, %v946
  %v1062 = vmul.f32 %v412, %v948
  %v1063 = vmul.f32 %v417, %v950
  %v1064 = vmul.f32 %v422, %v952
  %v1065 = vmul.f32 %v427, %v954
  %v1066 = vmul.f32 %v432, %v956
  %v1067 = vmul.f32 %v437, %v958
  %v1068 = vmul.f32 %v442, %v960
  %v1069 = vmul.f32 %v447, %v962
  %v1070 = vmul.f32 %v452, %v964
  %v1071 = vmul.f32 %v457, %v966
  %v1072 = vmul.f32 %v462, %v968
  %v1073 = vmul.f32 %v467, %v970
  %v1074 = vmul.f32 %v472, %v972
  %v1075 = vmul.f32 %v477, %v974
  %v1076 = vmul.f32 %v482, %v976
  %v1077 = vmul.f32 %v487, %v978
  %v1078 = vmul.f32 %v492, %v980
  %v1079 = vmul.f32 %v497, %v982
  %v1080 = vmul.f32 %v502, %v984
  %v1081 = vmul.f32 %v507, %v986
  %v1082 = vmul.f32 %v512, %v988
  %v1083 = vmul.f32 %v517, %v990
  %v1084 = vmul.f32 %v522, %v992
  %v1085 = vmul.f32 %v527, %v994
  %v1086 = vmul.f32 %v532, %v996
  %v1087 = vmul.f32 %v537, %v998
  %v1088 = vmul.f32 %v542, %v1000
  %v1089 = vmul.f32 %v547, %v1002
  %v1090 = vmul.f32 %v552, %v1004
  %v1091 = vmul.f32 %v557, %v1006
  %v1092 = vmul.f32 %v562, %v1008
  %v1093 = vmul.f32 %v567, %v1010
  %v1094 = vmul.f32 %v572, %v1012
  %v1095 = vmul.f32 %v577, %v1014
  %v1096 = vmul.f32 %v582, %v1016
  %v1097 = vmul.f32 %v587, %v1018
  %v1098 = vmul.f32 %v592, %v1020
  %v1099 = vmul.f32 %v597, %v1022
  %v1100 = vmul.f32 %v602, %v1024
  %v1101 = vmul.f32 %v607, %v1026
  %v1102 = vmul.f32 %v612, %v1028
  %v1103 = vmul.f32 %v617, %v1030
  %v1104 = vmul.f32 %v622, %v1032
  %v1105 = vmul.f32 %v627, %v1034
  %v1106 = vmul.f32 %v632, %v1036
  %v1107 = vmul.f32 %v637, %v1038
  %v1108 = vmul.f32 %v642, %v1040
  %v1109 = vmul.f32 %v647, %v1042
  %v1110 = vmul.f32 %v652, %v1044
  %v1111 = vmul.f32 %v657, %v1046
  %v1112 = vmul.f32 %v662, %v1048
  %vm1113 = vcmask 64512
  %1114 = vst.msk [vmem:[%s3] sm:$0xff] %vm1113, %v1049
  %1115 = vst.msk [vmem:[%s3 + $0x8] sm:$0xff] %vm1113, %v1050
  %1116 = vst.msk [vmem:[%s3 + $0x10] sm:$0xff] %vm1113, %v1051
  %1117 = vst.msk [vmem:[%s3 + $0x18] sm:$0xff] %vm1113, %v1052
  %1118 = vst.msk [vmem:[%s3 + $0x20] sm:$0xff] %vm1113, %v1053
  %1119 = vst.msk [vmem:[%s3 + $0x28] sm:$0xff] %vm1113, %v1054
  %1120 = vst.msk [vmem:[%s3 + $0x30] sm:$0xff] %vm1113, %v1055
  %1121 = vst.msk [vmem:[%s3 + $0x38] sm:$0xff] %vm1113, %v1056
  %1122 = vst.msk [vmem:[%s3 + $0x40] sm:$0xff] %vm1113, %v1057
  %1123 = vst.msk [vmem:[%s3 + $0x48] sm:$0xff] %vm1113, %v1058
  %1124 = vst.msk [vmem:[%s3 + $0x50] sm:$0xff] %vm1113, %v1059
  %1125 = vst.msk [vmem:[%s3 + $0x58] sm:$0xff] %vm1113, %v1060
  %1126 = vst.msk [vmem:[%s3 + $0x60] sm:$0xff] %vm1113, %v1061
  %1127 = vst.msk [vmem:[%s3 + $0x68] sm:$0xff] %vm1113, %v1062
  %1128 = vst.msk [vmem:[%s3 + $0x70] sm:$0xff] %vm1113, %v1063
  %1129 = vst.msk [vmem:[%s3 + $0x78] sm:$0xff] %vm1113, %v1064
  %1130 = vst.msk [vmem:[%s3 + $0x80] sm:$0xff] %vm1113, %v1065
  %1131 = vst.msk [vmem:[%s3 + $0x88] sm:$0xff] %vm1113, %v1066
  %1132 = vst.msk [vmem:[%s3 + $0x90] sm:$0xff] %vm1113, %v1067
  %1133 = vst.msk [vmem:[%s3 + $0x98] sm:$0xff] %vm1113, %v1068
  %1134 = vst.msk [vmem:[%s3 + $0xa0] sm:$0xff] %vm1113, %v1069
  %1135 = vst.msk [vmem:[%s3 + $0xa8] sm:$0xff] %vm1113, %v1070
  %1136 = vst.msk [vmem:[%s3 + $0xb0] sm:$0xff] %vm1113, %v1071
  %1137 = vst.msk [vmem:[%s3 + $0xb8] sm:$0xff] %vm1113, %v1072
  %1138 = vst.msk [vmem:[%s3 + $0xc0] sm:$0xff] %vm1113, %v1073
  %1139 = vst.msk [vmem:[%s3 + $0xc8] sm:$0xff] %vm1113, %v1074
  %1140 = vst.msk [vmem:[%s3 + $0xd0] sm:$0xff] %vm1113, %v1075
  %1141 = vst.msk [vmem:[%s3 + $0xd8] sm:$0xff] %vm1113, %v1076
  %1142 = vst.msk [vmem:[%s3 + $0xe0] sm:$0xff] %vm1113, %v1077
  %1143 = vst.msk [vmem:[%s3 + $0xe8] sm:$0xff] %vm1113, %v1078
  %1144 = vst.msk [vmem:[%s3 + $0xf0] sm:$0xff] %vm1113, %v1079
  %1145 = vst.msk [vmem:[%s3 + $0xf8] sm:$0xff] %vm1113, %v1080
  %1146 = vst.msk [vmem:[%s3 + $0x100] sm:$0xff] %vm1113, %v1081
  %1147 = vst.msk [vmem:[%s3 + $0x108] sm:$0xff] %vm1113, %v1082
  %1148 = vst.msk [vmem:[%s3 + $0x110] sm:$0xff] %vm1113, %v1083
  %1149 = vst.msk [vmem:[%s3 + $0x118] sm:$0xff] %vm1113, %v1084
  %1150 = vst.msk [vmem:[%s3 + $0x120] sm:$0xff] %vm1113, %v1085
  %1151 = vst.msk [vmem:[%s3 + $0x128] sm:$0xff] %vm1113, %v1086
  %1152 = vst.msk [vmem:[%s3 + $0x130] sm:$0xff] %vm1113, %v1087
  %1153 = vst.msk [vmem:[%s3 + $0x138] sm:$0xff] %vm1113, %v1088
  %1154 = vst.msk [vmem:[%s3 + $0x140] sm:$0xff] %vm1113, %v1089
  %1155 = vst.msk [vmem:[%s3 + $0x148] sm:$0xff] %vm1113, %v1090
  %1156 = vst.msk [vmem:[%s3 + $0x150] sm:$0xff] %vm1113, %v1091
  %1157 = vst.msk [vmem:[%s3 + $0x158] sm:$0xff] %vm1113, %v1092
  %1158 = vst.msk [vmem:[%s3 + $0x160] sm:$0xff] %vm1113, %v1093
  %1159 = vst.msk [vmem:[%s3 + $0x168] sm:$0xff] %vm1113, %v1094
  %1160 = vst.msk [vmem:[%s3 + $0x170] sm:$0xff] %vm1113, %v1095
  %1161 = vst.msk [vmem:[%s3 + $0x178] sm:$0xff] %vm1113, %v1096
  %1162 = vst.msk [vmem:[%s3 + $0x180] sm:$0xff] %vm1113, %v1097
  %1163 = vst.msk [vmem:[%s3 + $0x188] sm:$0xff] %vm1113, %v1098
  %1164 = vst.msk [vmem:[%s3 + $0x190] sm:$0xff] %vm1113, %v1099
  %1165 = vst.msk [vmem:[%s3 + $0x198] sm:$0xff] %vm1113, %v1100
  %1166 = vst.msk [vmem:[%s3 + $0x1a0] sm:$0xff] %vm1113, %v1101
  %1167 = vst.msk [vmem:[%s3 + $0x1a8] sm:$0xff] %vm1113, %v1102
  %1168 = vst.msk [vmem:[%s3 + $0x1b0] sm:$0xff] %vm1113, %v1103
  %1169 = vst.msk [vmem:[%s3 + $0x1b8] sm:$0xff] %vm1113, %v1104
  %1170 = vst.msk [vmem:[%s3 + $0x1c0] sm:$0xff] %vm1113, %v1105
  %1171 = vst.msk [vmem:[%s3 + $0x1c8] sm:$0xff] %vm1113, %v1106
  %1172 = vst.msk [vmem:[%s3 + $0x1d0] sm:$0xff] %vm1113, %v1107
  %1173 = vst.msk [vmem:[%s3 + $0x1d8] sm:$0xff] %vm1113, %v1108
  %1174 = vst.msk [vmem:[%s3 + $0x1e0] sm:$0xff] %vm1113, %v1109
  %1175 = vst.msk [vmem:[%s3 + $0x1e8] sm:$0xff] %vm1113, %v1110
  %1176 = vst.msk [vmem:[%s3 + $0x1f0] sm:$0xff] %vm1113, %v1111
  %1177 = vst.msk [vmem:[%s3 + $0x1f8] sm:$0xff] %vm1113, %v1112
  // Predicated region
  $region14: #{tpu_custom_call.1} parent=0 // pred_check
    _
  $region15: #{tpu_custom_call.1} parent=0 // pred_check_branch
    %1179 = sbr.rel (0) target = $region17
  $region16: #{tpu_custom_call.1} parent=0 // pred_region
    _
  $region17: #{tpu_custom_call.1} parent=0 // pred_fallthru
    _
  // Predicated region
  $region18: #{tpu_custom_call.1} parent=0 // pred_check
    _
  $region19: #{tpu_custom_call.1} parent=0 // pred_check_branch
    %1181 = sbr.rel (0) target = $region21
  $region20: #{tpu_custom_call.1} parent=0 // pred_region
    _
  $region21: #{tpu_custom_call.1} parent=0 // pred_fallthru
    _

</llo_original>
